<compile_context>
chip_gen: v5e
topology: v5e:2x2
jax: 0.10.0
libtpu: 0.0.40
codegen_flags: <defaults>
</compile_context>

<pallas_src>
import jax
import jax.numpy as jnp
import numpy as np
from jax.experimental import pallas as pl
from jax.experimental.pallas import tpu as pltpu


def tanh_attention_kernel(key_ref, q2_ref, w1t_ref, vw_ref, ctx_ref, wgt_ref):
    """One grid step processes a block of BT batch rows.

    key_ref : (BT, S, H)   streamed key block (dominant HBM traffic)
    q2_ref  : (BT, 1, H)   hoisted query projection (query@W2.T + b2 + b1)
    w1t_ref : (H, H)       W1^T in the MXU dtype (bf16 by default), resident
    vw_ref  : (1, 1, H)    v weight, f32 (used on the VPU)
    ctx_ref : (BT, H)      context output (sublane/lane dense)
    wgt_ref : (BT, S)      softmax weights output (sublane/lane dense)
    """
    bt, s, h = key_ref.shape
    mxu_dt = w1t_ref.dtype

    # --- W1 projection: ONE flattened (BT*S, H) @ (H, H) MXU matmul ---------
    # Reshape in the input dtype (layout-trivial for S % 8 == 0), then cast
    # the operand to the MXU dtype; accumulate in f32.
    k_flat = key_ref[...].reshape(bt * s, h)
    k1 = jnp.dot(k_flat.astype(mxu_dt), w1t_ref[...],
                 preferred_element_type=jnp.float32)               # (BT*S, H)

    # --- add hoisted query projection (b1 & b2 already folded in) + tanh ----
    t = jnp.tanh(k1.reshape(bt, s, h) + q2_ref[...].astype(jnp.float32))

    # --- v projection: VPU multiply + lane reduce (no M=1 MXU pushes) -------
    # (v's bias is dropped: softmax is shift-invariant along S.)
    att = jnp.sum(t * vw_ref[...].astype(jnp.float32), axis=-1)    # (BT, S)

    # --- softmax over the sequence (lane) axis -------------------------------
    m = jnp.max(att, axis=-1, keepdims=True)                       # (BT, 1)
    e = jnp.exp(att - m)
    w = e * pl.reciprocal(jnp.sum(e, axis=-1, keepdims=True), approx=True)

    # --- context: batched (1, S) @ (S, H) on the MXU, bf16 in / f32 acc -----
    ctx = jnp.einsum('bqs,bsh->bqh',
                     w.reshape(bt, 1, s).astype(mxu_dt),
                     key_ref[...].astype(mxu_dt),
                     preferred_element_type=jnp.float32)           # (BT, 1, H)

    ctx_ref[...] = ctx.reshape(bt, h).astype(ctx_ref.dtype)        # (BT, H)
    wgt_ref[...] = w.astype(wgt_ref.dtype)                         # (BT, S)


def _pick_bt(B, S, H, itemsize, block_b=None):
    """Batch rows per grid step.

    - Always divides B (no HBM padding of the key stream).
    - Derived from a VMEM budget for the double-buffered key block.
    - Prefers multiples of 8 so output stores stay sublane-dense.
    - Keeps >= 2 grid steps for larger B so both v7x TensorCores get work.
    """
    if block_b is None:
        key_block_budget = 4 * 1024 * 1024      # bytes of key per grid step
        block_b = max(1, key_block_budget // (S * H * itemsize))
    if B >= 16:
        block_b = min(block_b, B // 2)          # >= 2 blocks for 2-TC chips
    if B <= block_b:
        return B
    divisors = [d for d in range(1, block_b + 1) if B % d == 0]
    aligned = [d for d in divisors if d % 8 == 0]
    return max(aligned) if aligned else max(divisors)


def tanh_attention(key, query, params, *, block_b=None, mxu_dtype=jnp.bfloat16):
    """key: (B, S, H), query: (B, H) -> (context (B, H), weight (B, S))."""
    B, S, H = key.shape
    w1, b1, w2, b2, vw, vb = params
    del vb  # softmax is shift-invariant along S -> v's bias cannot affect outputs

    # Hoisted out of the kernel: one batched XLA matmul for all rows; b1 is
    # folded into the same epilogue, so the kernel has no bias operands.
    q2 = (jnp.dot(query, w2.T) + (b2 + b1))[:, None, :]        # (B, 1, H)
    w1t = w1.T                                                 # (H, H)
    if mxu_dtype is not None:
        w1t = w1t.astype(mxu_dtype)                            # bf16 MXU operand
    vwr = vw.reshape(1, 1, H).astype(jnp.float32)              # VPU operand

    # NOTE: the in-kernel (BT,S,H)<->(BT*S,H) reshape is layout-trivial only
    # when S % 8 == 0; otherwise it still runs but inserts a relayout copy.
    bt = _pick_bt(B, S, H, key.dtype.itemsize, block_b)
    n_blocks = B // bt

    # TODO(synk): for very large S*H, add a sequence-tiling grid axis with an
    # online-softmax (running max/sum) accumulator so the key block fits
    # v7x's 64 MiB VMEM while keeping a large-M W1 matmul.

    ctx, wgt = pl.pallas_call(
        tanh_attention_kernel,
        out_shape=(
            jax.ShapeDtypeStruct((B, H), key.dtype),           # context
            jax.ShapeDtypeStruct((B, S), jnp.float32),         # softmax weights
        ),
        grid_spec=pltpu.PrefetchScalarGridSpec(
            num_scalar_prefetch=0,
            grid=(n_blocks,),
            in_specs=[
                pl.BlockSpec((bt, S, H), lambda i: (i, 0, 0)),   # key block
                pl.BlockSpec((bt, 1, H), lambda i: (i, 0, 0)),   # q2 block
                # Constant block index -> VMEM-resident across grid steps.
                pl.BlockSpec((H, H),     lambda i: (0, 0)),      # W1^T
                pl.BlockSpec((1, 1, H),  lambda i: (0, 0, 0)),   # v weight
            ],
            out_specs=[
                pl.BlockSpec((bt, H), lambda i: (i, 0)),         # context
                pl.BlockSpec((bt, S), lambda i: (i, 0)),         # weights
            ],
        ),
        compiler_params=pltpu.CompilerParams(
            dimension_semantics=("parallel",),                   # batch -> 2 TCs
            vmem_limit_bytes=48 * 1024 * 1024,
        ),
    )(key, q2, w1t, vwr)

    return ctx, wgt


def _reference(key, query, params):
    w1, b1, w2, b2, vw, vb = params
    k1 = jnp.einsum("bsh,oh->bso", key, w1) + b1
    q2 = jnp.einsum("bh,oh->bo", query, w2) + b2
    t = jnp.tanh(k1 + q2[:, None, :])
    att = jnp.einsum("bsh,h->bs", t, vw[0]) + vb[0]
    w = jax.nn.softmax(att, axis=1)
    ctx = jnp.einsum("bs,bsh->bh", w, key)
    return ctx, w


if __name__ == "__main__":
    B, S, H = 2, 8, 32
    k0 = jax.random.PRNGKey(0)
    ks = jax.random.split(k0, 8)

    # Deterministic parameter init (PyTorch Linear-like uniform +-1/sqrt(H)).
    bound = 1.0 / np.sqrt(H)
    w1 = jax.random.uniform(ks[0], (H, H), jnp.float32, -bound, bound)
    b1 = jax.random.uniform(ks[1], (H,),   jnp.float32, -bound, bound)
    w2 = jax.random.uniform(ks[2], (H, H), jnp.float32, -bound, bound)
    b2 = jax.random.uniform(ks[3], (H,),   jnp.float32, -bound, bound)
    vw = jax.random.uniform(ks[4], (1, H), jnp.float32, -bound, bound)
    vb = jax.random.uniform(ks[5], (1,),   jnp.float32, -bound, bound)
    params = (w1, b1, w2, b2, vw, vb)

    key = jax.random.normal(ks[6], (B, S, H), jnp.float32)
    query = jax.random.normal(ks[7], (B, H), jnp.float32)

    ctx, wgt = tanh_attention(key, query, params)
    jax.block_until_ready((ctx, wgt))

    ctx_ref, wgt_ref = _reference(key, query, params)
    assert ctx.shape == (B, H) and wgt.shape == (B, S)
    # bf16 MXU operands (f32 accumulation) bound accuracy -> loosened tolerance.
    assert np.allclose(np.asarray(ctx), np.asarray(ctx_ref), atol=3e-2, rtol=3e-2)
    assert np.allclose(np.asarray(wgt), np.asarray(wgt_ref), atol=3e-2, rtol=3e-2)

    print("KERNEL_OK")
</pallas_src>

<mosaic_0001>
module attributes {stable_mosaic.version = 11 : i64} {
  func.func @tanh_attention_kernel(%arg0: i32, %arg1: memref<2x8x32xf32, #tpu.memory_space<vmem>>, %arg2: memref<2x1x32xf32, #tpu.memory_space<vmem>>, %arg3: memref<32x32xbf16, #tpu.memory_space<vmem>>, %arg4: memref<1x1x32xf32, #tpu.memory_space<vmem>>, %arg5: memref<2x32xf32, #tpu.memory_space<vmem>>, %arg6: memref<2x8xf32, #tpu.memory_space<vmem>>) attributes {dimension_semantics = [#tpu.dimension_semantics<parallel>], iteration_bounds = array<i64: 1>, scalar_prefetch = 0 : i64, scratch_operands = 0 : i64, tpu.core_type = #tpu.core_type<tc>, window_params = [{transform_indices = @transform_0, window_bounds = array<i64: 2, 8, 32>}, {transform_indices = @transform_1, window_bounds = array<i64: 2, 1, 32>}, {pipeline_mode = #tpu.pipeline_mode<synchronous>, transform_indices = @transform_2, window_bounds = array<i64: 32, 32>}, {pipeline_mode = #tpu.pipeline_mode<synchronous>, transform_indices = @transform_3, window_bounds = array<i64: 1, 1, 32>}, {transform_indices = @transform_4, window_bounds = array<i64: 2, 32>}, {transform_indices = @transform_5, window_bounds = array<i64: 2, 8>}]} {
    %c0 = arith.constant 0 : index
    %c0_0 = arith.constant 0 : index
    %c0_1 = arith.constant 0 : index
    %0 = vector.load %arg1[%c0, %c0_0, %c0_1] : memref<2x8x32xf32, #tpu.memory_space<vmem>>, vector<2x8x32xf32>
    %1 = vector.shape_cast %0 : vector<2x8x32xf32> to vector<16x32xf32>
    %2 = arith.truncf %1 : vector<16x32xf32> to vector<16x32xbf16>
    %c0_2 = arith.constant 0 : index
    %c0_3 = arith.constant 0 : index
    %3 = vector.load %arg3[%c0_2, %c0_3] : memref<32x32xbf16, #tpu.memory_space<vmem>>, vector<32x32xbf16>
    %cst = arith.constant dense<0.000000e+00> : vector<16x32xf32>
    %4 = tpu.matmul %2, %3, %cst {dimension_numbers = #tpu.dot_dimension_numbers<[1], [0], [0], [1], [0, 0, 1, 1], [], []>} : vector<16x32xbf16>, vector<32x32xbf16>, vector<16x32xf32> -> vector<16x32xf32>
    %5 = vector.shape_cast %4 : vector<16x32xf32> to vector<2x8x32xf32>
    %c0_4 = arith.constant 0 : index
    %c0_5 = arith.constant 0 : index
    %c0_6 = arith.constant 0 : index
    %6 = vector.load %arg2[%c0_4, %c0_5, %c0_6] : memref<2x1x32xf32, #tpu.memory_space<vmem>>, vector<2x1x32xf32>
    %7 = vector.broadcast %6 : vector<2x1x32xf32> to vector<2x8x32xf32>
    %8 = arith.addf %5, %7 : vector<2x8x32xf32>
    %9 = math.tanh %8 : vector<2x8x32xf32>
    %c0_7 = arith.constant 0 : index
    %c0_8 = arith.constant 0 : index
    %c0_9 = arith.constant 0 : index
    %10 = vector.load %arg4[%c0_7, %c0_8, %c0_9] : memref<1x1x32xf32, #tpu.memory_space<vmem>>, vector<1x1x32xf32>
    %11 = vector.broadcast %10 : vector<1x1x32xf32> to vector<2x8x32xf32>
    %12 = arith.mulf %9, %11 : vector<2x8x32xf32>
    %cst_10 = arith.constant dense<0.000000e+00> : vector<2x8xf32>
    %13 = vector.multi_reduction <add>, %12, %cst_10 [2] : vector<2x8x32xf32> to vector<2x8xf32>
    %cst_11 = arith.constant dense<0xFF800000> : vector<2xf32>
    %14 = vector.multi_reduction <maximumf>, %13, %cst_11 [1] : vector<2x8xf32> to vector<2xf32>
    %15 = vector.shape_cast %14 : vector<2xf32> to vector<2x1xf32>
    %16 = vector.broadcast %15 : vector<2x1xf32> to vector<2x8xf32>
    %17 = arith.subf %13, %16 : vector<2x8xf32>
    %18 = math.exp %17 : vector<2x8xf32>
    %cst_12 = arith.constant dense<0.000000e+00> : vector<2xf32>
    %19 = vector.multi_reduction <add>, %18, %cst_12 [1] : vector<2x8xf32> to vector<2xf32>
    %20 = vector.shape_cast %19 : vector<2xf32> to vector<2x1xf32>
    %21 = tpu.reciprocal %20 {approx = true} : vector<2x1xf32> -> vector<2x1xf32>
    %22 = vector.broadcast %21 : vector<2x1xf32> to vector<2x8xf32>
    %23 = arith.mulf %18, %22 : vector<2x8xf32>
    %24 = vector.shape_cast %23 : vector<2x8xf32> to vector<2x1x8xf32>
    %25 = arith.truncf %24 : vector<2x1x8xf32> to vector<2x1x8xbf16>
    %c0_13 = arith.constant 0 : index
    %c0_14 = arith.constant 0 : index
    %c0_15 = arith.constant 0 : index
    %26 = vector.load %arg1[%c0_13, %c0_14, %c0_15] : memref<2x8x32xf32, #tpu.memory_space<vmem>>, vector<2x8x32xf32>
    %27 = arith.truncf %26 : vector<2x8x32xf32> to vector<2x8x32xbf16>
    "tpu.trace_start"() <{level = 10 : i32, message = "bqs,bsh->bqh"}> : () -> ()
    %cst_16 = arith.constant dense<0.000000e+00> : vector<2x1x32xf32>
    %28 = tpu.matmul %25, %27, %cst_16 {dimension_numbers = #tpu.dot_dimension_numbers<[2], [1], [1], [2], [0, 0, 0, 1, 1, 2], [0], [0]>} : vector<2x1x8xbf16>, vector<2x8x32xbf16>, vector<2x1x32xf32> -> vector<2x1x32xf32>
    "tpu.trace_stop"() : () -> ()
    %29 = vector.shape_cast %28 : vector<2x1x32xf32> to vector<2x32xf32>
    %c0_17 = arith.constant 0 : index
    %c0_18 = arith.constant 0 : index
    %30 = vector.load %arg5[%c0_17, %c0_18] : memref<2x32xf32, #tpu.memory_space<vmem>>, vector<2x32xf32>
    tpu.vector_store %arg5[%c0_17, %c0_18], %29 {strides = array<i32>} : memref<2x32xf32, #tpu.memory_space<vmem>>, vector<2x32xf32>,
    %c0_19 = arith.constant 0 : index
    %c0_20 = arith.constant 0 : index
    %31 = vector.load %arg6[%c0_19, %c0_20] : memref<2x8xf32, #tpu.memory_space<vmem>>, vector<2x8xf32>
    tpu.vector_store %arg6[%c0_19, %c0_20], %23 {strides = array<i32>} : memref<2x8xf32, #tpu.memory_space<vmem>>, vector<2x8xf32>,
    return
  }
  func.func @transform_0(%arg0: i32) -> (i32, i32, i32) {
    %c0_i32 = arith.constant 0 : i32
    %c0_i32_0 = arith.constant 0 : i32
    %c0_i32_1 = arith.constant 0 : i32
    return %arg0, %c0_i32, %c0_i32_0 : i32, i32, i32
  }
  func.func @transform_1(%arg0: i32) -> (i32, i32, i32) {
    %c0_i32 = arith.constant 0 : i32
    %c0_i32_0 = arith.constant 0 : i32
    %c0_i32_1 = arith.constant 0 : i32
    return %arg0, %c0_i32, %c0_i32_0 : i32, i32, i32
  }
  func.func @transform_2(%arg0: i32) -> (i32, i32) {
    %c0_i32 = arith.constant 0 : i32
    %c0_i32_0 = arith.constant 0 : i32
    %c0_i32_1 = arith.constant 0 : i32
    return %c0_i32, %c0_i32_0 : i32, i32
  }
  func.func @transform_3(%arg0: i32) -> (i32, i32, i32) {
    %c0_i32 = arith.constant 0 : i32
    %c0_i32_0 = arith.constant 0 : i32
    %c0_i32_1 = arith.constant 0 : i32
    %c0_i32_2 = arith.constant 0 : i32
    return %c0_i32, %c0_i32_0, %c0_i32_1 : i32, i32, i32
  }
  func.func @transform_4(%arg0: i32) -> (i32, i32) {
    %c0_i32 = arith.constant 0 : i32
    %c0_i32_0 = arith.constant 0 : i32
    return %arg0, %c0_i32 : i32, i32
  }
  func.func @transform_5(%arg0: i32) -> (i32, i32) {
    %c0_i32 = arith.constant 0 : i32
    %c0_i32_0 = arith.constant 0 : i32
    return %arg0, %c0_i32 : i32, i32
  }
}

</mosaic_0001>

<llo_original>
// kernel: tpu_custom_call.1
$region0: #{tpu_custom_call.1}
  #allocation0 [shape = 'u32[]', space=smem, size = 0x4, offset = 0x4, fixed_abs, tag = 'smem constant byte address 0x4 - core index']
  #allocation1 [shape = 'u32[72,128]{1,0:T(1,128)}', space=vmem, size = 0x9000, scoped, tag = 'internal scratch']
  %s0 = inlined_call_operand.hbm [shape: f32[2,8,32], index: 0, kind: input, shape index: {}]
  %s1 = inlined_call_operand.hbm [shape: f32[2,1,32], index: 1, kind: input, shape index: {}]
  %s2 = inlined_call_operand.hbm [shape: bf16[32,32], index: 2, kind: input, shape index: {}]
  %s3 = inlined_call_operand.vmem [shape: f32[1,1,32], index: 3, kind: input, shape index: {}]
  %s4 = inlined_call_operand.hbm [shape: f32[2,32], index: 4, kind: output, shape index: {0}]
  %s5 = inlined_call_operand.hbm [shape: f32[2,8], index: 5, kind: output, shape index: {1}]
  %6 = xla_tuple %s4, %s5
  %s7 = sld [smem:[#allocation0]]
  $region46: #{tpu_custom_call.1} parent=0
    _
  %s9 = ssub.s32 1, %s7
  %s10 = scalar_select 0, %s9, %s7
  $region1: #{tpu_custom_call.1} parent=0
    #allocation2 [shape = 'u8[8192]{0}', space=vmem, size = 0x2000, scoped, tag = 'input window, operand 0, single buffered']
    #allocation3 [shape = 's32[1]{0}', space=sflag, size = 0x4, scoped, tag = 'scoped memory for tpu_custom_call.1']
    #allocation4 [shape = 's32[1]{0}', space=sflag, size = 0x4, scoped, tag = 'scoped memory for tpu_custom_call.1']
    #allocation5 [shape = 'u8[1024]{0}', space=vmem, size = 0x400, scoped, tag = 'input window, operand 1, single buffered']
    #allocation6 [shape = 's32[1]{0}', space=sflag, size = 0x4, scoped, tag = 'scoped memory for tpu_custom_call.1']
    #allocation7 [shape = 'u8[8192]{0}', space=vmem, size = 0x2000, scoped, tag = 'input window, operand 2, single buffered']
    #allocation8 [shape = 'u8[1024]{0}', space=vmem, size = 0x400, scoped, tag = 'output window, operand 0, single buffered']
    #allocation9 [shape = 'u8[1024]{0}', space=vmem, size = 0x400, scoped, tag = 'output window, operand 1, single buffered']
    #allocation10 [shape = 's32[1]{0}', space=sflag, size = 0x4, scoped, tag = 'scoped memory for tpu_custom_call.1']
    %11 = vsyncpa [#allocation3], 0
    %12 = vsyncpa [#allocation6], 0
    %13 = vsyncpa [#allocation4], 0
    %14 = vsyncpa [#allocation10], 0
    // Predicated region
    $region2: #{tpu_custom_call.1} parent=1 // pred_check
      _
    $region3: #{tpu_custom_call.1} parent=1 // pred_check_branch
      %16 = sbr.rel (0) target = $region5
    $region4: #{tpu_custom_call.1} parent=1 // pred_region
      %18 = vsyncadd [#allocation3], 0
      %s19 = sshll.u32 %s0, 4
      %s20 = int_to_ptr.hbm [resolvable:$true] %s19
      %s21 = sshll.u32 [#allocation2], 4
      %s22 = int_to_ptr.vmem [resolvable:$true] %s21
      %27 = dma.hbm_to_vmem [thread:$0]  %s20, 256, %s22, [#allocation3], 128, 128, 8
    $region5: #{tpu_custom_call.1} parent=1 // pred_fallthru
      _
    // Predicated region
    $region6: #{tpu_custom_call.1} parent=1 // pred_check
      _
    $region7: #{tpu_custom_call.1} parent=1 // pred_check_branch
      %29 = sbr.rel (0) target = $region9
    $region8: #{tpu_custom_call.1} parent=1 // pred_region
      %31 = vsyncadd [#allocation6], 0
      %s32 = sshll.u32 %s1, 4
      %s33 = int_to_ptr.hbm [resolvable:$true] %s32
      %s34 = sshll.u32 [#allocation5], 4
      %s35 = int_to_ptr.vmem [resolvable:$true] %s34
      %40 = dma.hbm_to_vmem [thread:$0]  %s33, 32, %s35, [#allocation6], 16, 16, 1
    $region9: #{tpu_custom_call.1} parent=1 // pred_fallthru
      _
    // Predicated region
    $region10: #{tpu_custom_call.1} parent=1 // pred_check
      _
    $region11: #{tpu_custom_call.1} parent=1 // pred_check_branch
      %42 = sbr.rel (0) target = $region13
    $region12: #{tpu_custom_call.1} parent=1 // pred_region
      %44 = vsyncadd [#allocation6], 0
      %s45 = sshll.u32 %s2, 4
      %s46 = int_to_ptr.hbm [resolvable:$true] %s45
      %s47 = sshll.u32 [#allocation7], 4
      %s48 = int_to_ptr.vmem [resolvable:$true] %s47
      %53 = dma.hbm_to_vmem [thread:$0]  %s46, 256, %s48, [#allocation6], 64, 64, 4
    $region13: #{tpu_custom_call.1} parent=1 // pred_fallthru
      _
    // Predicated region
    $region14: #{tpu_custom_call.1} parent=1 // pred_check
      _
    $region15: #{tpu_custom_call.1} parent=1 // pred_check_branch
      %55 = sbr.rel (0) target = $region17
    $region16: #{tpu_custom_call.1} parent=1 // pred_region
      _
    $region17: #{tpu_custom_call.1} parent=1 // pred_fallthru
      _
    // Predicated region
    $region18: #{tpu_custom_call.1} parent=1 // pred_check
      _
    $region19: #{tpu_custom_call.1} parent=1 // pred_check_branch
      %57 = sbr.rel (0) target = $region21
    $region20: #{tpu_custom_call.1} parent=1 // pred_region
      %59 = dma.done [#allocation3], 256
    $region21: #{tpu_custom_call.1} parent=1 // pred_fallthru
      _
    // Predicated region
    $region22: #{tpu_custom_call.1} parent=1 // pred_check
      _
    $region23: #{tpu_custom_call.1} parent=1 // pred_check_branch
      %61 = sbr.rel (0) target = $region25
    $region24: #{tpu_custom_call.1} parent=1 // pred_region
      %63 = dma.done [#allocation6], 32
    $region25: #{tpu_custom_call.1} parent=1 // pred_fallthru
      _
    // Predicated region
    $region26: #{tpu_custom_call.1} parent=1 // pred_check
      _
    $region27: #{tpu_custom_call.1} parent=1 // pred_check_branch
      %65 = sbr.rel (0) target = $region29
    $region28: #{tpu_custom_call.1} parent=1 // pred_region
      %67 = dma.done [#allocation6], 256
    $region29: #{tpu_custom_call.1} parent=1 // pred_fallthru
      _
    %v69 = vld [vmem:[#allocation2] sm:$0xff]
    %v70 = vld [vmem:[#allocation2 + $0x8] sm:$0xff]
    %v71 = vpack.c.bf16 %v70, %v69
    %v72 = vld [vmem:[#allocation7] sm:$0xf]
    %v73 = vld [vmem:[#allocation7 + $0x4] sm:$0xf]
    %v74 = vld [vmem:[#allocation7 + $0x8] sm:$0xf]
    %v75 = vld [vmem:[#allocation7 + $0xc] sm:$0xf]
    %v80 = vunpack.c.l.b16 %v72
    %v81 = vunpack.c.l.b16 %v73
    %v82 = vunpack.c.l.b16 %v74
    %v83 = vunpack.c.l.b16 %v75
    %v84 = vpack.c.b16 %v81, %v80
    %v85 = vpack.c.b16 %v83, %v82
    %vm88 = vcmask 261120
    %v90 = vsel %vm88, %v71, 0
    %92 = vmatpush.bf16.msra.mxu0 0
    %93 = vmatpush.bf16.msra.mxu0 0
    %94 = vmatpush.bf16.msra.mxu0 0
    %95 = vmatpush.bf16.msra.mxu0 0
    %96 = vmatpush.bf16.msra.mxu0 0
    %97 = vmatpush.bf16.msra.mxu0 0
    %98 = vmatpush.bf16.msra.mxu0 %v85
    %99 = vmatpush.bf16.msra.mxu0 %v84
    %100 = vmatmul.bf16.gmra.mxu0 %v90
    %v101 = vpop.f32.mrf.mxu0
    %v102 = vadd.f32 0.0, %v101
    %v103 = vpop.f32.mrf.mxu0
    %v104 = vadd.f32 0.0, %v103
    %105 = vdwg.mxu0
    %v106 = vld [vmem:[#allocation5] sm:$0x1]
    %v107 = vld [vmem:[#allocation5 + $0x1] sm:$0x1]
    %v110 = vperm.slane %v106, 0
    %v111 = vperm.slane %v107, 0
    %v114 = vadd.f32 %v102, %v110
    %v115 = vadd.f32 %v104, %v111
    %v116 = vtanh.pop %v114
    %v117 = vtanh.pop %v115
    %v118 = vld [vmem:[%s3] sm:$0x1]
    %v120 = vperm.slane %v118, 0
    %v122 = vmul.f32 %v116, %v120
    %v123 = vmul.f32 %v117, %v120
    %v124 = vsel %vm88, %v122, 0.0
    %125 = vadd.xlane.f32.xlu0 %v124
    %v126 = vpop.xlane.xlu0 %125
    %v127 = vsel %vm88, %v123, 0.0
    %128 = vadd.xlane.f32.xlu0 %v127
    %v129 = vpop.xlane.xlu0 %128
    %v132 = vlaneseq
    %v133 = vand.u32 %v132, 127
    %v134 = vperm.slane %v126, %v133
    %v135 = vperm.slane %v129, %v133
    %vm136 = vcmask 1041409
    %v137 = vsel %vm136, %v135, %v134
    %vm139 = vcmask 58368
    %v140 = vsel %vm139, %v137, -inf
    %141 = vmax.xlane.f32.xlu0 %v140
    %v142 = vpop.xlane.xlu0 %141
    %v144 = vperm.slane %v142, 0
    %v145 = vperm.slane %v142, 1
    %v148 = vsub.f32 %v126, %v144
    %v149 = vsub.f32 %v129, %v145
    %v150 = vmul.f32 %v148, 1.442695
    %v151 = vpow.pop %v150
    %v152 = vmul.f32 %v149, 1.442695
    %v153 = vpow.pop %v152
    %156 = vset.pattern.permute.xlu0 0
    %157 = vperm.xlu0 %156, %v151
    %v158 = vpop.permute.xlu0 %157
    %159 = vset.pattern.permute.xlu0 0
    %160 = vperm.xlu0 %159, %v153
    %v161 = vpop.permute.xlu0 %160
    %v162 = vperm.slane %v158, %v133
    %v163 = vperm.slane %v161, %v133
    %v164 = vsel %vm136, %v163, %v162
    %v166 = vsel %vm139, %v164, 0.0
    %167 = vadd.xlane.f32.xlu0 %v166
    %v168 = vpop.xlane.xlu0 %167
    %v169 = vrcp.pop %v168
    %v171 = vperm.slane %v169, 0
    %v172 = vperm.slane %v169, 1
    %v175 = vmul.f32 %v151, %v171
    %v176 = vmul.f32 %v153, %v172
    %v177 = vpack.c.bf16 %v175, %v175
    %v178 = vpack.c.bf16 %v176, %v176
    %v179 = vpack.c.bf16 %v69, %v69
    %v180 = vpack.c.bf16 %v70, %v70
    %v182 = vunpack.c.l.b16 %v177
    %v183 = vpack.c.b16 %v182, %v182
    %v184 = vunpack.c.l.b16 %v183
    %185 = vset.pattern.permute.xlu0 0
    %186 = vperm.xlu0 %185, %v184
    %v187 = vpop.permute.xlu0 %186
    %v188 = vperm.slane %v187, %v133
    %v189 = vpack.c.b16 %v188, %v188
    %vm190 = vcmask 64512
    %v192 = vsel %vm190, %v189, 0
    %vm194 = vcmask 1043456
    %v196 = vsel %vm194, %v179, 0
    %198 = vmatpush.bf16.msra.mxu0 0
    %199 = vmatpush.bf16.msra.mxu0 0
    %200 = vmatpush.bf16.msra.mxu0 0
    %201 = vmatpush.bf16.msra.mxu0 0
    %202 = vmatpush.bf16.msra.mxu0 0
    %203 = vmatpush.bf16.msra.mxu0 0
    %204 = vmatpush.bf16.msra.mxu0 0
    %205 = vmatpush.bf16.msra.mxu0 %v196
    %206 = vmatmul.bf16.gmra.mxu0 %v192
    %v207 = vpop.f32.mrf.mxu0
    %v208 = vadd.f32 0.0, %v207
    %v209 = vpop.f32.mrf.mxu0
    %210 = vdwg.mxu0
    %v212 = vunpack.c.l.b16 %v178
    %v213 = vpack.c.b16 %v212, %v212
    %v214 = vunpack.c.l.b16 %v213
    %215 = vset.pattern.permute.xlu0 0
    %216 = vperm.xlu0 %215, %v214
    %v217 = vpop.permute.xlu0 %216
    %v218 = vperm.slane %v217, %v133
    %v219 = vpack.c.b16 %v218, %v218
    %v221 = vsel %vm190, %v219, 0
    %v224 = vsel %vm194, %v180, 0
    %226 = vmatpush.bf16.msra.mxu0 0
    %227 = vmatpush.bf16.msra.mxu0 0
    %228 = vmatpush.bf16.msra.mxu0 0
    %229 = vmatpush.bf16.msra.mxu0 0
    %230 = vmatpush.bf16.msra.mxu0 0
    %231 = vmatpush.bf16.msra.mxu0 0
    %232 = vmatpush.bf16.msra.mxu0 0
    %233 = vmatpush.bf16.msra.mxu0 %v224
    %234 = vmatmul.bf16.gmra.mxu0 %v221
    %v235 = vpop.f32.mrf.mxu0
    %v236 = vadd.f32 0.0, %v235
    %v237 = vpop.f32.mrf.mxu0
    %238 = vdwg.mxu0
    %v241 = vrot.slane %v236, 7
    %v242 = vsel %vm136, %v241, %v208
    %vm244 = vcmask 254976
    %245 = vst.msk [vmem:[#allocation8] sm:$0x3] %vm244, %v242
    %248 = vset.pattern.permute.xlu0 0
    %249 = vperm.xlu0 %248, %v175
    %v250 = vpop.permute.xlu0 %249
    %251 = vset.pattern.permute.xlu0 0
    %252 = vperm.xlu0 %251, %v176
    %v253 = vpop.permute.xlu0 %252
    %v254 = vperm.slane %v250, %v133
    %v255 = vperm.slane %v253, %v133
    %v256 = vsel %vm136, %v255, %v254
    %258 = vst.msk [vmem:[#allocation9] sm:$0x3] %vm139, %v256
    // Predicated region
    $region30: #{tpu_custom_call.1} parent=1 // pred_check
      _
    $region31: #{tpu_custom_call.1} parent=1 // pred_check_branch
      %260 = sbr.rel (0) target = $region33
    $region32: #{tpu_custom_call.1} parent=1 // pred_region
      %262 = vsyncadd [#allocation4], 0
      %s264 = sshll.u32 [#allocation8], 4
      %s265 = int_to_ptr.vmem [resolvable:$true] %s264
      %s266 = sshll.u32 %s4, 4
      %s267 = int_to_ptr.hbm [resolvable:$true] %s266
      %269 = dma.vmem_to_hbm [thread:$0]  %s265, 32, %s267, [#allocation4]
    $region33: #{tpu_custom_call.1} parent=1 // pred_fallthru
      _
    // Predicated region
    $region34: #{tpu_custom_call.1} parent=1 // pred_check
      _
    $region35: #{tpu_custom_call.1} parent=1 // pred_check_branch
      %271 = sbr.rel (0) target = $region37
    $region36: #{tpu_custom_call.1} parent=1 // pred_region
      %273 = vsyncadd [#allocation10], 0
      %s275 = sshll.u32 [#allocation9], 4
      %s276 = int_to_ptr.vmem [resolvable:$true] %s275
      %s277 = sshll.u32 %s5, 4
      %s278 = int_to_ptr.hbm [resolvable:$true] %s277
      %280 = dma.vmem_to_hbm [thread:$0]  %s276, 32, %s278, [#allocation10]
    $region37: #{tpu_custom_call.1} parent=1 // pred_fallthru
      _
    // Predicated region
    $region38: #{tpu_custom_call.1} parent=1 // pred_check
      _
    $region39: #{tpu_custom_call.1} parent=1 // pred_check_branch
      %282 = sbr.rel (0) target = $region41
    $region40: #{tpu_custom_call.1} parent=1 // pred_region
      %284 = dma.done [#allocation4], 32
    $region41: #{tpu_custom_call.1} parent=1 // pred_fallthru
      _
    // Predicated region
    $region42: #{tpu_custom_call.1} parent=1 // pred_check
      _
    $region43: #{tpu_custom_call.1} parent=1 // pred_check_branch
      %286 = sbr.rel (0) target = $region45
    $region44: #{tpu_custom_call.1} parent=1 // pred_region
      %288 = dma.done [#allocation10], 32
    $region45: #{tpu_custom_call.1} parent=1 // pred_fallthru
      _
    %289 = vsyncpa [#allocation3], 1
    %290 = vsyncpa [#allocation6], 1
    %291 = vsyncpa [#allocation4], 1
    %292 = vsyncpa [#allocation10], 1

</llo_original>
